<compile_context>
chip_gen: v7x
topology: tpu7x:2x2x1
jax: 0.10.0
libtpu: 0.0.40
codegen_flags: <defaults>
</compile_context>

<pallas_src>
import jax
import jax.numpy as jnp
from jax import lax
from jax.experimental import pallas as pl
from jax.experimental.pallas import tpu as pltpu

MATMUL_DTYPE = jnp.bfloat16   # MXU operand dtype; accumulation is always f32
NORM_EPS = 1e-12              # F.normalize eps


def _round_up(x, m):
    return ((x + m - 1) // m) * m


# ---------------------------------------------------------------------------
# Fused kernel: visual 2-layer MLP (BN folded) + ReLU + L2 norm + cosine sim.
# ---------------------------------------------------------------------------
def _matching_kernel(x_ref, w1_ref, b1_ref, w2_ref, b2_ref, lang_ref, out_ref):
    # x:    (tile_n, Din_pad)  bf16   visual features of one (batch, n-tile)
    # w1:   (Din_pad, D_pad)   bf16 ; b1: (1, D_pad) f32   (BN1 folded in)
    # w2:   (D_pad,   D_pad)   bf16 ; b2: (1, D_pad) f32   (BN2 folded in)
    # lang: (B_pad,   D_pad)   f32    normalized language embeddings (resident)
    # out:  (1, tile_n)        f32    cosine similarities for this tile
    b = pl.program_id(0)

    h = jnp.dot(x_ref[...], w1_ref[...],
                preferred_element_type=jnp.float32) + b1_ref[...]
    h = jnp.maximum(h, 0.0)                         # ReLU (Dropout = id, eval)
    e = jnp.dot(h.astype(MATMUL_DTYPE), w2_ref[...],
                preferred_element_type=jnp.float32) + b2_ref[...]

    # F.normalize(p=2, dim=1): e / max(||e||, eps) == e * rsqrt(max(||e||^2, eps^2))
    ssq = jnp.sum(e * e, axis=1, keepdims=True)
    en = e * lax.rsqrt(jnp.maximum(ssq, NORM_EPS * NORM_EPS))

    l = lang_ref[pl.ds(b, 1), :]                    # (1, D_pad) for batch row b
    # cossim = l @ en^T  (contract the joint-embedding dim of both operands)
    out_ref[...] = lax.dot_general(
        l, en, (((1,), (1,)), ((), ())), preferred_element_type=jnp.float32)


# ---------------------------------------------------------------------------
# Parameter setup (deterministic) + BN folding glue.
# ---------------------------------------------------------------------------
def make_branch_params(key, in_dim, jemb_dim):
    ks = jax.random.split(key, 8)
    return {
        "w1": jax.random.normal(ks[0], (in_dim, jemb_dim), jnp.float32) * 0.1,
        "b1": jax.random.normal(ks[1], (jemb_dim,), jnp.float32) * 0.1,
        "bn1_gamma": 1.0 + 0.1 * jax.random.normal(ks[2], (jemb_dim,), jnp.float32),
        "bn1_beta": 0.1 * jax.random.normal(ks[3], (jemb_dim,), jnp.float32),
        "bn1_mean": 0.1 * jax.random.normal(ks[4], (jemb_dim,), jnp.float32),
        "bn1_var": 1.0 + 0.1 * jnp.abs(jax.random.normal(ks[5], (jemb_dim,), jnp.float32)),
        "w2": jax.random.normal(ks[6], (jemb_dim, jemb_dim), jnp.float32) * 0.1,
        "b2": jax.random.normal(ks[7], (jemb_dim,), jnp.float32) * 0.1,
        # second BN initialized like fresh nn.BatchNorm1d (identity in eval)
        "bn2_gamma": jnp.ones((jemb_dim,), jnp.float32),
        "bn2_beta": jnp.zeros((jemb_dim,), jnp.float32),
        "bn2_mean": jnp.zeros((jemb_dim,), jnp.float32),
        "bn2_var": jnp.ones((jemb_dim,), jnp.float32),
    }


def fold_bn(w, b, gamma, beta, mean, var, eps=1e-5):
    s = gamma / jnp.sqrt(var + eps)
    w_f = w * s[None, :]
    b_f = b * s + beta - mean * s
    return w_f, b_f.reshape(1, -1)


def fold_branch(p):
    w1, b1 = fold_bn(p["w1"], p["b1"], p["bn1_gamma"], p["bn1_beta"],
                     p["bn1_mean"], p["bn1_var"])
    w2, b2 = fold_bn(p["w2"], p["b2"], p["bn2_gamma"], p["bn2_beta"],
                     p["bn2_mean"], p["bn2_var"])
    return w1, b1, w2, b2


# ---------------------------------------------------------------------------
# Forward wrapper: padding, lang branch (XLA), fused pallas_call.
# ---------------------------------------------------------------------------
def matching_forward(visual_input, lang_input, vis_params, lang_params,
                     *, tile_n=None):
    B, N, vis_dim = visual_input.shape
    assert lang_input.shape[0] == B

    vw1, vb1, vw2, vb2 = fold_branch(vis_params)
    lw1, lb1, lw2, lb2 = fold_branch(lang_params)
    D = vw1.shape[1]

    # --- language branch: only B rows -> plain XLA, then resident in VMEM ---
    hl = jnp.maximum(lang_input @ lw1 + lb1, 0.0)
    el = hl @ lw2 + lb2
    el = el * lax.rsqrt(
        jnp.maximum(jnp.sum(el * el, axis=1, keepdims=True),
                    NORM_EPS * NORM_EPS))

    # --- pad feature dims to 128 lanes (exact: padded lanes stay zero) ------
    din_p = _round_up(vis_dim, 128)
    d_p = _round_up(D, 128)
    b_p = _round_up(B, 8)

    w1p = jnp.pad(vw1, ((0, din_p - vis_dim), (0, d_p - D))).astype(MATMUL_DTYPE)
    b1p = jnp.pad(vb1, ((0, 0), (0, d_p - D)))
    w2p = jnp.pad(vw2, ((0, d_p - D), (0, d_p - D))).astype(MATMUL_DTYPE)
    b2p = jnp.pad(vb2, ((0, 0), (0, d_p - D)))
    lang_emb = jnp.pad(el, ((0, b_p - B), (0, d_p - D)))

    # --- tile the N (blocks-per-expression) axis ----------------------------
    if tile_n is None:
        # Large row tiles (512) for MXU / HBM-roofline efficiency; for very
        # large Din on 64-MiB-VMEM chips (v7x) pass a smaller tile_n.
        tile_n = min(512, _round_up(N, 8))
    tile_n = max(8, _round_up(tile_n, 8))
    n_p = _round_up(N, tile_n)

    x = jnp.pad(visual_input,
                ((0, 0), (0, n_p - N), (0, din_p - vis_dim))
                ).astype(MATMUL_DTYPE)                      # (B, N_pad, Din_pad)

    grid = (B, n_p // tile_n)
    out = pl.pallas_call(
        _matching_kernel,
        out_shape=jax.ShapeDtypeStruct((B, 1, n_p), jnp.float32),
        grid_spec=pltpu.PrefetchScalarGridSpec(
            num_scalar_prefetch=0,
            grid=grid,
            in_specs=[
                pl.BlockSpec((None, tile_n, din_p), lambda b, j: (b, j, 0)),
                pl.BlockSpec((din_p, d_p), lambda b, j: (0, 0)),
                pl.BlockSpec((1, d_p), lambda b, j: (0, 0)),
                pl.BlockSpec((d_p, d_p), lambda b, j: (0, 0)),
                pl.BlockSpec((1, d_p), lambda b, j: (0, 0)),
                pl.BlockSpec((b_p, d_p), lambda b, j: (0, 0)),
            ],
            out_specs=pl.BlockSpec((None, 1, tile_n), lambda b, j: (b, 0, j)),
        ),
        compiler_params=pltpu.CompilerParams(
            dimension_semantics=("parallel", "parallel"),
            vmem_limit_bytes=32 * 1024 * 1024,
        ),
    )(x, w1p, b1p, w2p, b2p, lang_emb)

    return out[:, 0, :N]


# ---------------------------------------------------------------------------
# Pure-JAX f32 reference (same math) for the correctness check.
# ---------------------------------------------------------------------------
def matching_reference(visual_input, lang_input, vis_params, lang_params):
    B, N = visual_input.shape[0], visual_input.shape[1]
    vf = visual_input.reshape(B * N, -1)

    def branch(x, p):
        w1, b1, w2, b2 = fold_branch(p)
        h = jnp.maximum(x @ w1 + b1, 0.0)
        e = h @ w2 + b2
        n = jnp.sqrt(jnp.sum(e * e, axis=1, keepdims=True))
        return e / jnp.maximum(n, NORM_EPS)

    ve = branch(vf, vis_params).reshape(B, N, -1)
    le = branch(lang_input, lang_params)
    return jnp.sum(ve * le[:, None, :], axis=2)


if __name__ == "__main__":
    B, N = 2, 8
    vis_dim, lang_dim, jemb_dim = 32, 32, 32

    key = jax.random.PRNGKey(0)
    k_vis, k_lang, k_vp, k_lp = jax.random.split(key, 4)

    visual_input = jax.random.normal(k_vis, (B, N, vis_dim), jnp.float32)
    lang_input = jax.random.normal(k_lang, (B, lang_dim), jnp.float32)

    vis_params = make_branch_params(k_vp, vis_dim, jemb_dim)
    lang_params = make_branch_params(k_lp, lang_dim, jemb_dim)

    fwd = jax.jit(matching_forward)
    out = fwd(visual_input, lang_input, vis_params, lang_params)
    out = jax.block_until_ready(out)

    ref = matching_reference(visual_input, lang_input, vis_params, lang_params)
    assert out.shape == (B, N)
    # bf16 matmul operands (f32 accumulation) vs. pure-f32 reference.
    assert jnp.allclose(out, ref, atol=2e-2, rtol=2e-2), "mismatch vs reference"

    print("KERNEL_OK")
</pallas_src>

<mosaic_0001>
module attributes {stable_mosaic.version = 11 : i64} {
  func.func @_matching_kernel(%arg0: i32, %arg1: i32, %arg2: memref<1x8x128xbf16, #tpu.memory_space<vmem>>, %arg3: memref<128x128xbf16, #tpu.memory_space<vmem>>, %arg4: memref<1x128xf32, #tpu.memory_space<vmem>>, %arg5: memref<128x128xbf16, #tpu.memory_space<vmem>>, %arg6: memref<1x128xf32, #tpu.memory_space<vmem>>, %arg7: memref<8x128xf32, #tpu.memory_space<vmem>>, %arg8: memref<1x1x8xf32, #tpu.memory_space<vmem>>) attributes {dimension_semantics = [#tpu.dimension_semantics<parallel>, #tpu.dimension_semantics<parallel>], iteration_bounds = array<i64: 2, 1>, scalar_prefetch = 0 : i64, scratch_operands = 0 : i64, tpu.core_type = #tpu.core_type<tc>, window_params = [{transform_indices = @transform_0, window_bounds = array<i64: 1, 8, 128>}, {pipeline_mode = #tpu.pipeline_mode<synchronous>, transform_indices = @transform_1, window_bounds = array<i64: 128, 128>}, {pipeline_mode = #tpu.pipeline_mode<synchronous>, transform_indices = @transform_2, window_bounds = array<i64: 1, 128>}, {pipeline_mode = #tpu.pipeline_mode<synchronous>, transform_indices = @transform_3, window_bounds = array<i64: 128, 128>}, {pipeline_mode = #tpu.pipeline_mode<synchronous>, transform_indices = @transform_4, window_bounds = array<i64: 1, 128>}, {pipeline_mode = #tpu.pipeline_mode<synchronous>, transform_indices = @transform_5, window_bounds = array<i64: 8, 128>}, {transform_indices = @transform_6, window_bounds = array<i64: 1, 1, 8>}]} {
    %c0 = arith.constant 0 : index
    %c0_0 = arith.constant 0 : index
    %c0_1 = arith.constant 0 : index
    %0 = vector.load %arg2[%c0, %c0_0, %c0_1] : memref<1x8x128xbf16, #tpu.memory_space<vmem>>, vector<1x8x128xbf16>
    %1 = vector.shape_cast %0 : vector<1x8x128xbf16> to vector<8x128xbf16>
    %c0_2 = arith.constant 0 : index
    %c0_3 = arith.constant 0 : index
    %2 = vector.load %arg3[%c0_2, %c0_3] : memref<128x128xbf16, #tpu.memory_space<vmem>>, vector<128x128xbf16>
    %cst = arith.constant dense<0.000000e+00> : vector<8x128xf32>
    %3 = tpu.matmul %1, %2, %cst {dimension_numbers = #tpu.dot_dimension_numbers<[1], [0], [0], [1], [0, 0, 1, 1], [], []>} : vector<8x128xbf16>, vector<128x128xbf16>, vector<8x128xf32> -> vector<8x128xf32>
    %c0_4 = arith.constant 0 : index
    %c0_5 = arith.constant 0 : index
    %4 = vector.load %arg4[%c0_4, %c0_5] : memref<1x128xf32, #tpu.memory_space<vmem>>, vector<1x128xf32>
    %5 = vector.broadcast %4 : vector<1x128xf32> to vector<8x128xf32>
    %6 = arith.addf %3, %5 : vector<8x128xf32>
    %cst_6 = arith.constant 0.000000e+00 : f32
    %7 = vector.broadcast %cst_6 : f32 to vector<8x128xf32>
    %8 = arith.maximumf %6, %7 : vector<8x128xf32>
    %9 = arith.truncf %8 : vector<8x128xf32> to vector<8x128xbf16>
    %c0_7 = arith.constant 0 : index
    %c0_8 = arith.constant 0 : index
    %10 = vector.load %arg5[%c0_7, %c0_8] : memref<128x128xbf16, #tpu.memory_space<vmem>>, vector<128x128xbf16>
    %cst_9 = arith.constant dense<0.000000e+00> : vector<8x128xf32>
    %11 = tpu.matmul %9, %10, %cst_9 {dimension_numbers = #tpu.dot_dimension_numbers<[1], [0], [0], [1], [0, 0, 1, 1], [], []>} : vector<8x128xbf16>, vector<128x128xbf16>, vector<8x128xf32> -> vector<8x128xf32>
    %c0_10 = arith.constant 0 : index
    %c0_11 = arith.constant 0 : index
    %12 = vector.load %arg6[%c0_10, %c0_11] : memref<1x128xf32, #tpu.memory_space<vmem>>, vector<1x128xf32>
    %13 = vector.broadcast %12 : vector<1x128xf32> to vector<8x128xf32>
    %14 = arith.addf %11, %13 : vector<8x128xf32>
    %15 = arith.mulf %14, %14 : vector<8x128xf32>
    %cst_12 = arith.constant dense<0.000000e+00> : vector<8xf32>
    %16 = vector.multi_reduction <add>, %15, %cst_12 [1] : vector<8x128xf32> to vector<8xf32>
    %17 = vector.shape_cast %16 : vector<8xf32> to vector<8x1xf32>
    %cst_13 = arith.constant 1.000000e-24 : f32
    %18 = vector.broadcast %cst_13 : f32 to vector<8x1xf32>
    %19 = arith.maximumf %17, %18 : vector<8x1xf32>
    %20 = math.rsqrt %19 : vector<8x1xf32>
    %21 = vector.broadcast %20 : vector<8x1xf32> to vector<8x128xf32>
    %22 = arith.mulf %14, %21 : vector<8x128xf32>
    %23 = arith.index_cast %arg0 : i32 to index
    %c0_14 = arith.constant 0 : index
    %24 = vector.load %arg7[%23, %c0_14] : memref<8x128xf32, #tpu.memory_space<vmem>>, vector<1x128xf32>
    %cst_15 = arith.constant dense<0.000000e+00> : vector<1x8xf32>
    %25 = tpu.matmul %24, %22, %cst_15 {dimension_numbers = #tpu.dot_dimension_numbers<[1], [1], [0], [0], [0, 0, 1, 0], [], []>} : vector<1x128xf32>, vector<8x128xf32>, vector<1x8xf32> -> vector<1x8xf32>
    %c0_16 = arith.constant 0 : index
    %c0_17 = arith.constant 0 : index
    %c0_18 = arith.constant 0 : index
    %26 = vector.load %arg8[%c0_16, %c0_17, %c0_18] : memref<1x1x8xf32, #tpu.memory_space<vmem>>, vector<1x1x8xf32>
    %27 = vector.shape_cast %26 : vector<1x1x8xf32> to vector<1x8xf32>
    %28 = vector.shape_cast %25 : vector<1x8xf32> to vector<1x1x8xf32>
    tpu.vector_store %arg8[%c0_16, %c0_17, %c0_18], %28 {strides = array<i32>} : memref<1x1x8xf32, #tpu.memory_space<vmem>>, vector<1x1x8xf32>,
    return
  }
  func.func @transform_0(%arg0: i32, %arg1: i32) -> (i32, i32, i32) {
    %c0_i32 = arith.constant 0 : i32
    %c0_i32_0 = arith.constant 0 : i32
    return %arg0, %arg1, %c0_i32 : i32, i32, i32
  }
  func.func @transform_1(%arg0: i32, %arg1: i32) -> (i32, i32) {
    %c0_i32 = arith.constant 0 : i32
    %c0_i32_0 = arith.constant 0 : i32
    %c0_i32_1 = arith.constant 0 : i32
    return %c0_i32, %c0_i32_0 : i32, i32
  }
  func.func @transform_2(%arg0: i32, %arg1: i32) -> (i32, i32) {
    %c0_i32 = arith.constant 0 : i32
    %c0_i32_0 = arith.constant 0 : i32
    %c0_i32_1 = arith.constant 0 : i32
    return %c0_i32, %c0_i32_0 : i32, i32
  }
  func.func @transform_3(%arg0: i32, %arg1: i32) -> (i32, i32) {
    %c0_i32 = arith.constant 0 : i32
    %c0_i32_0 = arith.constant 0 : i32
    %c0_i32_1 = arith.constant 0 : i32
    return %c0_i32, %c0_i32_0 : i32, i32
  }
  func.func @transform_4(%arg0: i32, %arg1: i32) -> (i32, i32) {
    %c0_i32 = arith.constant 0 : i32
    %c0_i32_0 = arith.constant 0 : i32
    %c0_i32_1 = arith.constant 0 : i32
    return %c0_i32, %c0_i32_0 : i32, i32
  }
  func.func @transform_5(%arg0: i32, %arg1: i32) -> (i32, i32) {
    %c0_i32 = arith.constant 0 : i32
    %c0_i32_0 = arith.constant 0 : i32
    %c0_i32_1 = arith.constant 0 : i32
    return %c0_i32, %c0_i32_0 : i32, i32
  }
  func.func @transform_6(%arg0: i32, %arg1: i32) -> (i32, i32, i32) {
    %c0_i32 = arith.constant 0 : i32
    %c0_i32_0 = arith.constant 0 : i32
    return %arg0, %c0_i32, %arg1 : i32, i32, i32
  }
}

</mosaic_0001>

<llo_original>
// kernel: matching_forward.1
$region0: #{matching_forward.1}
  #allocation0 [shape = 'u32[]', space=smem, size = 0x4, offset = 0x4, fixed_abs, tag = 'smem constant byte address 0x4 - core index']
  #allocation1 [shape = 'u32[144,128]{1,0:T(1,128)}', space=vmem, size = 0x12000, scoped, tag = 'internal scratch']
  %s0 = inlined_call_operand.vmem [shape: bf16[2,8,128], index: 0, kind: input, shape index: {}]
  %s1 = inlined_call_operand.vmem [shape: bf16[128,128], index: 1, kind: input, shape index: {}]
  %s2 = inlined_call_operand.vmem [shape: f32[1,128], index: 2, kind: input, shape index: {}]
  %s3 = inlined_call_operand.vmem [shape: bf16[128,128], index: 3, kind: input, shape index: {}]
  %s4 = inlined_call_operand.vmem [shape: f32[1,128], index: 4, kind: input, shape index: {}]
  %s5 = inlined_call_operand.vmem [shape: f32[8,128], index: 5, kind: input, shape index: {}]
  %s6 = inlined_call_operand.hbm [shape: f32[2,1,8], index: 6, kind: output, shape index: {}]
  %s7 = sld [smem:[#allocation0]]
  $region57: #{matching_forward.1} parent=0
    _
  %s9 = ssub.s32 1, %s7
  %s10 = scalar_select 0, %s9, %s7
  $region1: #{matching_forward.1} parent=0
    #allocation2 [shape = 'u8[1024]{0}', space=vmem, size = 0x400, scoped, tag = 'output window, operand 0']
    #allocation3 [shape = 's32[2]{0}', space=sflag, size = 0x8, scoped, tag = 'scoped memory for matching_forward.1']
    %11 = vsyncpa [#allocation3], 0
    %s12 = scalar_lea.sflag [#allocation3], 1
    %13 = vsyncpa %s12, 0
    loop: start=0, step=1, limit=4
    $region2: #{matching_forward.1} parent=1 // loop_pre_header
      _
    $region3: #{matching_forward.1} parent=1 // loop_header
      %s15 = sphi 0, %s19
      %p16 = scmp.ge.s32.totalorder %s15, 4
      %s22 = sphi 0, %s34
      %s23 = sphi 0, %s30
      %s24 = sphi 0, %s22
      %s25 = sphi 0, %s23
      %s26 = sphi 0, %s24
      %s27 = sphi 0, %s25
      %s39 = sphi 0, %s41
      %s42 = sphi 0, %s39
      %s43 = sphi 0, %s42
      %s59 = sphi 0, %s43
      %s63 = sphi 0, %s63
      %s65 = sphi 0, %s63
      %s66 = sphi 0, %s65
      %s80 = sphi 0, %s66
      %s84 = sphi 0, %s84
      %s86 = sphi 0, %s84
      %s87 = sphi 0, %s86
      %s101 = sphi 0, %s87
      %s105 = sphi 0, %s105
      %s107 = sphi 0, %s105
      %s108 = sphi 0, %s107
      %s122 = sphi 0, %s108
      %s126 = sphi 0, %s126
      %s128 = sphi 0, %s126
      %s129 = sphi 0, %s128
      %s143 = sphi 0, %s129
      %s147 = sphi 0, %s147
      %s149 = sphi 0, %s147
      %s150 = sphi 0, %s149
      %s164 = sphi 0, %s150
      %s172 = sphi 0, %s174
      %s175 = sphi 0, %s172
      %s176 = sphi 0, %s175
      %s192 = sphi 0, %s176
    $region4: #{matching_forward.1} parent=1 // loop_header_branch
      %18 = sbr.rel (%p16) target = $region8
    $region5: #{matching_forward.1} parent=1 // loop_body
      %s20 = ssub.s32 %s15, 1
      %s21 = ssub.s32 %s15, 2
      %s28 = sadd.s32 1, %s23
      %p29 = scmp.ge.s32.totalorder %s28, 1
      %s30 = scalar_select %p29, 0, %s28
      %s31 = sadd.s32 1, %s22
      %s32 = scalar_select %p29, %s31, %s22
      %p33 = scmp.ge.s32.totalorder %s32, 2
      %s34 = scalar_select %p33, 0, %s32
      %s35 = ssub.s32 %s22, %s34
      %s36 = ssub.s32 %s23, %s30
      %s37 = sor.u32 %s35, %s36
      %p38 = scmp.eq.s32.totalorder %s37, 0
      %s40 = sadd.s32 %s39, 1
      %s41 = scalar_select %p38, %s39, %s40
      %p44 = pneg %p38
      %p45 = scmp.eq.s32.totalorder %s15, 1
      %p46 = por %p44, %p45
      %p47 = scmp.ne.s32.totalorder %s39, %s42
      %p48 = scmp.eq.s32.totalorder %s15, 0
      %p49 = por %p47, %p48
      %p50 = scmp.ne.s32.totalorder %s39, %s42
      %p51 = scmp.eq.s32.totalorder %s20, 1
      %p52 = por %p50, %p51
      %p53 = scmp.ne.s32.totalorder %s42, %s43
      %p54 = scmp.eq.s32.totalorder %s20, 0
      %p55 = por %p53, %p54
      %p56 = scmp.ne.s32.totalorder %s42, %s43
      %p57 = scmp.eq.s32.totalorder %s21, 1
      %p58 = por %p56, %p57
      %p60 = scmp.ne.s32.totalorder %s43, %s59
      %p61 = scmp.eq.s32.totalorder %s21, 0
      %p62 = por %p60, %p61
      %s64 = sadd.s32 %s63, 1
      %p67 = scmp.eq.s32.totalorder %s15, 1
      %p68 = scmp.ne.s32.totalorder %s63, %s65
      %p69 = scmp.eq.s32.totalorder %s15, 0
      %p70 = por %p68, %p69
      %p71 = scmp.ne.s32.totalorder %s63, %s65
      %p72 = scmp.eq.s32.totalorder %s20, 1
      %p73 = por %p71, %p72
      %p74 = scmp.ne.s32.totalorder %s65, %s66
      %p75 = scmp.eq.s32.totalorder %s20, 0
      %p76 = por %p74, %p75
      %p77 = scmp.ne.s32.totalorder %s65, %s66
      %p78 = scmp.eq.s32.totalorder %s21, 1
      %p79 = por %p77, %p78
      %p81 = scmp.ne.s32.totalorder %s66, %s80
      %p82 = scmp.eq.s32.totalorder %s21, 0
      %p83 = por %p81, %p82
      %s85 = sadd.s32 %s84, 1
      %p88 = scmp.eq.s32.totalorder %s15, 1
      %p89 = scmp.ne.s32.totalorder %s84, %s86
      %p90 = scmp.eq.s32.totalorder %s15, 0
      %p91 = por %p89, %p90
      %p92 = scmp.ne.s32.totalorder %s84, %s86
      %p93 = scmp.eq.s32.totalorder %s20, 1
      %p94 = por %p92, %p93
      %p95 = scmp.ne.s32.totalorder %s86, %s87
      %p96 = scmp.eq.s32.totalorder %s20, 0
      %p97 = por %p95, %p96
      %p98 = scmp.ne.s32.totalorder %s86, %s87
      %p99 = scmp.eq.s32.totalorder %s21, 1
      %p100 = por %p98, %p99
      %p102 = scmp.ne.s32.totalorder %s87, %s101
      %p103 = scmp.eq.s32.totalorder %s21, 0
      %p104 = por %p102, %p103
      %s106 = sadd.s32 %s105, 1
      %p109 = scmp.eq.s32.totalorder %s15, 1
      %p110 = scmp.ne.s32.totalorder %s105, %s107
      %p111 = scmp.eq.s32.totalorder %s15, 0
      %p112 = por %p110, %p111
      %p113 = scmp.ne.s32.totalorder %s105, %s107
      %p114 = scmp.eq.s32.totalorder %s20, 1
      %p115 = por %p113, %p114
      %p116 = scmp.ne.s32.totalorder %s107, %s108
      %p117 = scmp.eq.s32.totalorder %s20, 0
      %p118 = por %p116, %p117
      %p119 = scmp.ne.s32.totalorder %s107, %s108
      %p120 = scmp.eq.s32.totalorder %s21, 1
      %p121 = por %p119, %p120
      %p123 = scmp.ne.s32.totalorder %s108, %s122
      %p124 = scmp.eq.s32.totalorder %s21, 0
      %p125 = por %p123, %p124
      %s127 = sadd.s32 %s126, 1
      %p130 = scmp.eq.s32.totalorder %s15, 1
      %p131 = scmp.ne.s32.totalorder %s126, %s128
      %p132 = scmp.eq.s32.totalorder %s15, 0
      %p133 = por %p131, %p132
      %p134 = scmp.ne.s32.totalorder %s126, %s128
      %p135 = scmp.eq.s32.totalorder %s20, 1
      %p136 = por %p134, %p135
      %p137 = scmp.ne.s32.totalorder %s128, %s129
      %p138 = scmp.eq.s32.totalorder %s20, 0
      %p139 = por %p137, %p138
      %p140 = scmp.ne.s32.totalorder %s128, %s129
      %p141 = scmp.eq.s32.totalorder %s21, 1
      %p142 = por %p140, %p141
      %p144 = scmp.ne.s32.totalorder %s129, %s143
      %p145 = scmp.eq.s32.totalorder %s21, 0
      %p146 = por %p144, %p145
      %s148 = sadd.s32 %s147, 1
      %p151 = scmp.eq.s32.totalorder %s15, 1
      %p152 = scmp.ne.s32.totalorder %s147, %s149
      %p153 = scmp.eq.s32.totalorder %s15, 0
      %p154 = por %p152, %p153
      %p155 = scmp.ne.s32.totalorder %s147, %s149
      %p156 = scmp.eq.s32.totalorder %s20, 1
      %p157 = por %p155, %p156
      %p158 = scmp.ne.s32.totalorder %s149, %s150
      %p159 = scmp.eq.s32.totalorder %s20, 0
      %p160 = por %p158, %p159
      %p161 = scmp.ne.s32.totalorder %s149, %s150
      %p162 = scmp.eq.s32.totalorder %s21, 1
      %p163 = por %p161, %p162
      %p165 = scmp.ne.s32.totalorder %s150, %s164
      %p166 = scmp.eq.s32.totalorder %s21, 0
      %p167 = por %p165, %p166
      %s168 = ssub.s32 %s22, %s34
      %s169 = ssub.s32 %s23, %s30
      %s170 = sor.u32 %s168, %s169
      %p171 = scmp.eq.s32.totalorder %s170, 0
      %s173 = sadd.s32 %s172, 1
      %s174 = scalar_select %p171, %s172, %s173
      %p177 = pneg %p171
      %p178 = scmp.eq.s32.totalorder %s15, 1
      %p179 = por %p177, %p178
      %p180 = scmp.ne.s32.totalorder %s172, %s175
      %p181 = scmp.eq.s32.totalorder %s15, 0
      %p182 = por %p180, %p181
      %p183 = scmp.ne.s32.totalorder %s172, %s175
      %p184 = scmp.eq.s32.totalorder %s20, 1
      %p185 = por %p183, %p184
      %p186 = scmp.ne.s32.totalorder %s175, %s176
      %p187 = scmp.eq.s32.totalorder %s20, 0
      %p188 = por %p186, %p187
      %p189 = scmp.ne.s32.totalorder %s175, %s176
      %p190 = scmp.eq.s32.totalorder %s21, 1
      %p191 = por %p189, %p190
      %p193 = scmp.ne.s32.totalorder %s176, %s192
      %p194 = scmp.eq.s32.totalorder %s21, 0
      %p195 = por %p193, %p194
      %p196 = scmp.le.s32.totalorder 1, %s15
      %p197 = scmp.lt.s32.totalorder %s15, 3
      %p198 = pnand %p196, %p197
      %p199 = pneg %p198
      // Predicated region
      $region9: #{matching_forward.1} parent=5 // pred_check
        _
      $region10: #{matching_forward.1} parent=5 // pred_check_branch
        %201 = sbr.rel (%p198) target = $region12
      $region11: #{matching_forward.1} parent=5 // pred_region
        %s202 = ssub.s32 %s15, 1
        // Predicated region
        $region13: #{matching_forward.1} parent=11 // pred_check
          %p203 = pneg %p76
        $region14: #{matching_forward.1} parent=11 // pred_check_branch
          %205 = sbr.rel (%p203) target = $region16
        $region15: #{matching_forward.1} parent=11 // pred_region
          _
        $region16: #{matching_forward.1} parent=11 // pred_fallthru
          _
        // Predicated region
        $region17: #{matching_forward.1} parent=11 // pred_check
          %p206 = pneg %p97
        $region18: #{matching_forward.1} parent=11 // pred_check_branch
          %208 = sbr.rel (%p206) target = $region20
        $region19: #{matching_forward.1} parent=11 // pred_region
          _
        $region20: #{matching_forward.1} parent=11 // pred_fallthru
          _
        // Predicated region
        $region21: #{matching_forward.1} parent=11 // pred_check
          %p209 = pneg %p118
        $region22: #{matching_forward.1} parent=11 // pred_check_branch
          %211 = sbr.rel (%p209) target = $region24
        $region23: #{matching_forward.1} parent=11 // pred_region
          _
        $region24: #{matching_forward.1} parent=11 // pred_fallthru
          _
        // Predicated region
        $region25: #{matching_forward.1} parent=11 // pred_check
          %p212 = pneg %p139
        $region26: #{matching_forward.1} parent=11 // pred_check_branch
          %214 = sbr.rel (%p212) target = $region28
        $region27: #{matching_forward.1} parent=11 // pred_region
          _
        $region28: #{matching_forward.1} parent=11 // pred_fallthru
          _
        // Predicated region
        $region29: #{matching_forward.1} parent=11 // pred_check
          %p215 = pneg %p160
        $region30: #{matching_forward.1} parent=11 // pred_check_branch
          %217 = sbr.rel (%p215) target = $region32
        $region31: #{matching_forward.1} parent=11 // pred_region
          _
        $region32: #{matching_forward.1} parent=11 // pred_fallthru
          _
      $region12: #{matching_forward.1} parent=5 // pred_fallthru
        _
      %p218 = scmp.lt.s32.totalorder %s15, 2
      // Predicated region
      $region33: #{matching_forward.1} parent=5 // pred_check
        %p219 = pneg %p218
      $region34: #{matching_forward.1} parent=5 // pred_check_branch
        %221 = sbr.rel (%p219) target = $region36
      $region35: #{matching_forward.1} parent=5 // pred_region
        // Predicated region
        $region37: #{matching_forward.1} parent=35 // pred_check
          %p222 = pneg %p49
        $region38: #{matching_forward.1} parent=35 // pred_check_branch
          %224 = sbr.rel (%p222) target = $region40
        $region39: #{matching_forward.1} parent=35 // pred_region
          %p225 = scmp.lt.s32.totalorder %s22, 1
          %s226 = scalar_select %p225, %s22, 1
          %p227 = scmp.lt.s32.totalorder %s23, 0
          %s228 = scalar_select %p227, %s23, 0
          %s229 = sadd.s32 %s228, %s226
          %s230 = smul.addr %s229, 4
          %s231 = scalar_lea.vmem %s0, %s230
        $region40: #{matching_forward.1} parent=35 // pred_fallthru
          _
      $region36: #{matching_forward.1} parent=5 // pred_fallthru
        _
      %p232 = scmp.le.s32.totalorder 1, %s15
      %p233 = scmp.lt.s32.totalorder %s15, 3
      %p234 = pnand %p232, %p233
      %p235 = pneg %p234
      // Predicated region
      $region41: #{matching_forward.1} parent=5 // pred_check
        _
      $region42: #{matching_forward.1} parent=5 // pred_check_branch
        %237 = sbr.rel (%p234) target = $region44
      $region43: #{matching_forward.1} parent=5 // pred_region
        %s238 = ssub.s32 %s15, 1
        %p239 = scmp.lt.s32.totalorder %s24, 1
        %s240 = scalar_select %p239, %s24, 1
        %p241 = scmp.lt.s32.totalorder %s25, 0
        %s242 = scalar_select %p241, %s25, 0
        %s243 = sadd.s32 %s242, %s240
        %s244 = smul.addr %s243, 4
        %s245 = scalar_lea.vmem %s0, %s244
        %p246 = pneg %p55
        %p247 = pneg %p52
        %p248 = pneg %p76
        %p249 = pneg %p73
        %p250 = pneg %p97
        %p251 = pneg %p94
        %p252 = pneg %p118
        %p253 = pneg %p115
        %p254 = pneg %p139
        %p255 = pneg %p136
        %p256 = pneg %p160
        %p257 = pneg %p157
        %p258 = pneg %p188
        %p259 = pneg %p185
        %s260 = sand.u32 %s175, 1
        %s261 = scalar_lea.sflag [#allocation3], %s260
        %s262 = sand.u32 %s175, 1
        %s263 = scalar_lea.vmem [#allocation2], %s262
        %p264 = scmp.lt.s32.totalorder %s24, 1
        %s265 = scalar_select %p264, %s24, 1
        %p266 = scmp.lt.s32.totalorder %s25, 0
        %s267 = scalar_select %p266, %s25, 0
        %s268 = sadd.s32 %s267, %s265
        %s269 = smul.addr %s268, 4
        %s270 = scalar_lea.vmem %s0, %s269
        %v272 = vld [vmem:[%s270] sm:$0xf]
        %v273 = vld [vmem:[%s1] sm:$0xf]
        %v274 = vld [vmem:[%s1 + $0x4] sm:$0xf]
        %v275 = vld [vmem:[%s1 + $0x8] sm:$0xf]
        %v276 = vld [vmem:[%s1 + $0xc] sm:$0xf]
        %v277 = vld [vmem:[%s1 + $0x10] sm:$0xf]
        %v278 = vld [vmem:[%s1 + $0x14] sm:$0xf]
        %v279 = vld [vmem:[%s1 + $0x18] sm:$0xf]
        %v280 = vld [vmem:[%s1 + $0x1c] sm:$0xf]
        %v281 = vld [vmem:[%s1 + $0x20] sm:$0xf]
        %v282 = vld [vmem:[%s1 + $0x24] sm:$0xf]
        %v283 = vld [vmem:[%s1 + $0x28] sm:$0xf]
        %v284 = vld [vmem:[%s1 + $0x2c] sm:$0xf]
        %v285 = vld [vmem:[%s1 + $0x30] sm:$0xf]
        %v286 = vld [vmem:[%s1 + $0x34] sm:$0xf]
        %v287 = vld [vmem:[%s1 + $0x38] sm:$0xf]
        %v288 = vld [vmem:[%s1 + $0x3c] sm:$0xf]
        %v289 = vld [vmem:[%s2] sm:$0x1]
        %v291 = vlaneseq
        %v292 = vshrl.u32 %v291, 7
        %v293 = vsub.s32 0, %v292
        %v294 = vrot.slane %v289, %v293
        %v312 = vunpack.c.l.b16 %v273
        %v313 = vunpack.c.l.b16 %v274
        %v314 = vunpack.c.l.b16 %v275
        %v315 = vunpack.c.l.b16 %v276
        %v316 = vunpack.c.l.b16 %v277
        %v317 = vunpack.c.l.b16 %v278
        %v318 = vunpack.c.l.b16 %v279
        %v319 = vunpack.c.l.b16 %v280
        %v320 = vunpack.c.l.b16 %v281
        %v321 = vunpack.c.l.b16 %v282
        %v322 = vunpack.c.l.b16 %v283
        %v323 = vunpack.c.l.b16 %v284
        %v324 = vunpack.c.l.b16 %v285
        %v325 = vunpack.c.l.b16 %v286
        %v326 = vunpack.c.l.b16 %v287
        %v327 = vunpack.c.l.b16 %v288
        %v328 = vpack.c.b16 %v313, %v312
        %v329 = vpack.c.b16 %v315, %v314
        %v330 = vpack.c.b16 %v317, %v316
        %v331 = vpack.c.b16 %v319, %v318
        %v332 = vpack.c.b16 %v321, %v320
        %v333 = vpack.c.b16 %v323, %v322
        %v334 = vpack.c.b16 %v325, %v324
        %v335 = vpack.c.b16 %v327, %v326
        %344 = vmatprep.subr.bf16.mxu0 0
        %345 = vmatpush1.bf16.msra.mxu0 %v328
        %346 = vmatprep.subr.bf16.mxu0 0
        %347 = vmatpush1.bf16.msra.mxu0 %v329
        %348 = vmatprep.subr.bf16.mxu0 0
        %349 = vmatpush1.bf16.msra.mxu0 %v330
        %350 = vmatprep.subr.bf16.mxu0 0
        %351 = vmatpush1.bf16.msra.mxu0 %v331
        %352 = vmatprep.subr.bf16.mxu0 0
        %353 = vmatpush1.bf16.msra.mxu0 %v332
        %354 = vmatprep.subr.bf16.mxu0 0
        %355 = vmatpush1.bf16.msra.mxu0 %v333
        %356 = vmatprep.subr.bf16.mxu0 0
        %357 = vmatpush1.bf16.msra.mxu0 %v334
        %358 = vmatprep.subr.bf16.mxu0 0
        %359 = vmatpush1.bf16.msra.mxu0 %v335
        %360 = vmatprep.subr.bf16.mxu0 0
        %361 = vmatpush1.bf16.msra.mxu0 0
        %362 = vmatprep.subr.bf16.mxu0 0
        %363 = vmatpush1.bf16.msra.mxu0 0
        %364 = vmatprep.subr.bf16.mxu0 0
        %365 = vmatpush1.bf16.msra.mxu0 0
        %366 = vmatprep.subr.bf16.mxu0 0
        %367 = vmatpush1.bf16.msra.mxu0 0
        %368 = vmatprep.subr.bf16.mxu0 0
        %369 = vmatpush1.bf16.msra.mxu0 0
        %370 = vmatprep.subr.bf16.mxu0 0
        %371 = vmatpush1.bf16.msra.mxu0 0
        %372 = vmatprep.subr.bf16.mxu0 0
        %373 = vmatpush1.bf16.msra.mxu0 0
        %374 = vmatprep.subr.bf16.mxu0 0
        %375 = vmatpush1.bf16.msra.mxu0 0
        %376 = vmatprep.mubr.bf16.mxu0 0
        %377 = vmatmul.mubr.bf16.gmra.mrb[0].mxu0 %v272
        %v378 = vpop.f32.mrb[0].mxu0
        %v379 = vadd.f32 %v294, %v378
        %v380 = vpop.f32.mrb[0].mxu0
        %v381 = vpop.f32.mrb[0].mxu0
        %v382 = vpop.f32.mrb[0].mxu0
        %383 = vdwg.mxu0
        %v384 = vmax.f32 %v379, 0.0
        %v385 = vpack.c.bf16 %v384, %v384
        %v386 = vld [vmem:[%s3] sm:$0xf]
        %v387 = vld [vmem:[%s3 + $0x4] sm:$0xf]
        %v388 = vld [vmem:[%s3 + $0x8] sm:$0xf]
        %v389 = vld [vmem:[%s3 + $0xc] sm:$0xf]
        %v390 = vld [vmem:[%s3 + $0x10] sm:$0xf]
        %v391 = vld [vmem:[%s3 + $0x14] sm:$0xf]
        %v392 = vld [vmem:[%s3 + $0x18] sm:$0xf]
        %v393 = vld [vmem:[%s3 + $0x1c] sm:$0xf]
        %v394 = vld [vmem:[%s3 + $0x20] sm:$0xf]
        %v395 = vld [vmem:[%s3 + $0x24] sm:$0xf]
        %v396 = vld [vmem:[%s3 + $0x28] sm:$0xf]
        %v397 = vld [vmem:[%s3 + $0x2c] sm:$0xf]
        %v398 = vld [vmem:[%s3 + $0x30] sm:$0xf]
        %v399 = vld [vmem:[%s3 + $0x34] sm:$0xf]
        %v400 = vld [vmem:[%s3 + $0x38] sm:$0xf]
        %v401 = vld [vmem:[%s3 + $0x3c] sm:$0xf]
        %v402 = vld [vmem:[%s4] sm:$0x1]
        %v404 = vlaneseq
        %v405 = vshrl.u32 %v404, 7
        %v406 = vsub.s32 0, %v405
        %v407 = vrot.slane %v402, %v406
        %v425 = vunpack.c.l.b16 %v386
        %v426 = vunpack.c.l.b16 %v387
        %v427 = vunpack.c.l.b16 %v388
        %v428 = vunpack.c.l.b16 %v389
        %v429 = vunpack.c.l.b16 %v390
        %v430 = vunpack.c.l.b16 %v391
        %v431 = vunpack.c.l.b16 %v392
        %v432 = vunpack.c.l.b16 %v393
        %v433 = vunpack.c.l.b16 %v394
        %v434 = vunpack.c.l.b16 %v395
        %v435 = vunpack.c.l.b16 %v396
        %v436 = vunpack.c.l.b16 %v397
        %v437 = vunpack.c.l.b16 %v398
        %v438 = vunpack.c.l.b16 %v399
        %v439 = vunpack.c.l.b16 %v400
        %v440 = vunpack.c.l.b16 %v401
        %v441 = vpack.c.b16 %v426, %v425
        %v442 = vpack.c.b16 %v428, %v427
        %v443 = vpack.c.b16 %v430, %v429
        %v444 = vpack.c.b16 %v432, %v431
        %v445 = vpack.c.b16 %v434, %v433
        %v446 = vpack.c.b16 %v436, %v435
        %v447 = vpack.c.b16 %v438, %v437
        %v448 = vpack.c.b16 %v440, %v439
        %457 = vmatprep.subr.bf16.mxu0 0
        %458 = vmatpush1.bf16.msra.mxu0 %v441
        %459 = vmatprep.subr.bf16.mxu0 0
        %460 = vmatpush1.bf16.msra.mxu0 %v442
        %461 = vmatprep.subr.bf16.mxu0 0
        %462 = vmatpush1.bf16.msra.mxu0 %v443
        %463 = vmatprep.subr.bf16.mxu0 0
        %464 = vmatpush1.bf16.msra.mxu0 %v444
        %465 = vmatprep.subr.bf16.mxu0 0
        %466 = vmatpush1.bf16.msra.mxu0 %v445
        %467 = vmatprep.subr.bf16.mxu0 0
        %468 = vmatpush1.bf16.msra.mxu0 %v446
        %469 = vmatprep.subr.bf16.mxu0 0
        %470 = vmatpush1.bf16.msra.mxu0 %v447
        %471 = vmatprep.subr.bf16.mxu0 0
        %472 = vmatpush1.bf16.msra.mxu0 %v448
        %473 = vmatprep.subr.bf16.mxu0 0
        %474 = vmatpush1.bf16.msra.mxu0 0
        %475 = vmatprep.subr.bf16.mxu0 0
        %476 = vmatpush1.bf16.msra.mxu0 0
        %477 = vmatprep.subr.bf16.mxu0 0
        %478 = vmatpush1.bf16.msra.mxu0 0
        %479 = vmatprep.subr.bf16.mxu0 0
        %480 = vmatpush1.bf16.msra.mxu0 0
        %481 = vmatprep.subr.bf16.mxu0 0
        %482 = vmatpush1.bf16.msra.mxu0 0
        %483 = vmatprep.subr.bf16.mxu0 0
        %484 = vmatpush1.bf16.msra.mxu0 0
        %485 = vmatprep.subr.bf16.mxu0 0
        %486 = vmatpush1.bf16.msra.mxu0 0
        %487 = vmatprep.subr.bf16.mxu0 0
        %488 = vmatpush1.bf16.msra.mxu0 0
        %489 = vmatprep.mubr.bf16.mxu0 0
        %490 = vmatmul.mubr.bf16.gmra.mrb[0].mxu0 %v385
        %v491 = vpop.f32.mrb[0].mxu0
        %v492 = vadd.f32 %v407, %v491
        %v493 = vpop.f32.mrb[0].mxu0
        %v494 = vpop.f32.mrb[0].mxu0
        %v495 = vpop.f32.mrb[0].mxu0
        %496 = vdwg.mxu0
        %v497 = vmul.f32 %v492, %v492
        %498 = vadd.xlane.f32.xlu0 %v497
        %v499 = vpop.xlane.xlu0 %498
        %v500 = vmax.f32 %v499, 1e-24
        %v501 = vrsqrt.pop %v500
        %v502 = vmul.f32 %v492, %v501
        %s503 = scalar_lea.vmem %s5, %s24
        %v504 = vld [vmem:[%s503] sm:$0x1]
        %505 = vmatprep.subr.mxu0 0.0
        %506 = vmatpush1.xpose.msra.mxu0 %v502
        %507 = vmatprep.subr.mxu0 0.0
        %508 = vmatpush1.xpose.msra.mxu0 0.0
        %509 = vmatprep.subr.mxu0 0.0
        %510 = vmatpush1.xpose.msra.mxu0 0.0
        %511 = vmatprep.subr.mxu0 0.0
        %512 = vmatpush1.xpose.msra.mxu0 0.0
        %513 = vmatprep.subr.mxu0 0.0
        %514 = vmatpush1.xpose.msra.mxu0 0.0
        %515 = vmatprep.subr.mxu0 0.0
        %516 = vmatpush1.xpose.msra.mxu0 0.0
        %517 = vmatprep.subr.mxu0 0.0
        %518 = vmatpush1.xpose.msra.mxu0 0.0
        %519 = vmatprep.subr.mxu0 0.0
        %520 = vmatpush1.xpose.msra.mxu0 0.0
        %521 = vmatprep.subr.mxu0 0.0
        %522 = vmatpush1.xpose.msra.mxu0 0.0
        %523 = vmatprep.subr.mxu0 0.0
        %524 = vmatpush1.xpose.msra.mxu0 0.0
        %525 = vmatprep.subr.mxu0 0.0
        %526 = vmatpush1.xpose.msra.mxu0 0.0
        %527 = vmatprep.subr.mxu0 0.0
        %528 = vmatpush1.xpose.msra.mxu0 0.0
        %529 = vmatprep.subr.mxu0 0.0
        %530 = vmatpush1.xpose.msra.mxu0 0.0
        %531 = vmatprep.subr.mxu0 0.0
        %532 = vmatpush1.xpose.msra.mxu0 0.0
        %533 = vmatprep.subr.mxu0 0.0
        %534 = vmatpush1.xpose.msra.mxu0 0.0
        %535 = vmatprep.subr.mxu0 0.0
        %536 = vmatpush1.xpose.msra.mxu0 0.0
        %537 = vmatprep.subr.mxu0 0.0
        %538 = vmatpush1.xpose.msra.mxu0 0.0
        %539 = vmatprep.subr.mxu0 0.0
        %540 = vmatpush1.xpose.msra.mxu0 0.0
        %541 = vmatprep.subr.mxu0 0.0
        %542 = vmatpush1.xpose.msra.mxu0 0.0
        %543 = vmatprep.subr.mxu0 0.0
        %544 = vmatpush1.xpose.msra.mxu0 0.0
        %545 = vmatprep.subr.mxu0 0.0
        %546 = vmatpush1.xpose.msra.mxu0 0.0
        %547 = vmatprep.subr.mxu0 0.0
        %548 = vmatpush1.xpose.msra.mxu0 0.0
        %549 = vmatprep.subr.mxu0 0.0
        %550 = vmatpush1.xpose.msra.mxu0 0.0
        %551 = vmatprep.subr.mxu0 0.0
        %552 = vmatpush1.xpose.msra.mxu0 0.0
        %553 = vmatprep.subr.mxu0 0.0
        %554 = vmatpush1.xpose.msra.mxu0 0.0
        %555 = vmatprep.subr.mxu0 0.0
        %556 = vmatpush1.xpose.msra.mxu0 0.0
        %557 = vmatprep.subr.mxu0 0.0
        %558 = vmatpush1.xpose.msra.mxu0 0.0
        %559 = vmatprep.subr.mxu0 0.0
        %560 = vmatpush1.xpose.msra.mxu0 0.0
        %561 = vmatprep.subr.mxu0 0.0
        %562 = vmatpush1.xpose.msra.mxu0 0.0
        %563 = vmatprep.subr.mxu0 0.0
        %564 = vmatpush1.xpose.msra.mxu0 0.0
        %565 = vmatprep.subr.mxu0 0.0
        %566 = vmatpush1.xpose.msra.mxu0 0.0
        %567 = vmatprep.subr.mxu0 0.0
        %568 = vmatpush1.xpose.msra.mxu0 0.0
        %569 = vmatprep.mubr.f32.mxu0 0.0
        %570 = vmatmul.mubr.f32.gmra.mrb[0].mxu0 %v504
        %v571 = vpop.f32.mrb[0].mxu0
        %v572 = vadd.f32 0.0, %v571
        %v573 = vpop.f32.mrb[0].mxu0
        %574 = vdwg.mxu0
        %vm575 = vcmask 57344
        %576 = vst.msk [vmem:[%s263] sm:$0x1] %vm575, %v572
        %s577 = sand.u32 %s175, 1
        %s578 = scalar_lea.sflag [#allocation3], %s577
        %s579 = sand.u32 %s175, 1
        %s580 = scalar_lea.vmem [#allocation2], %s579
        // Predicated region
        $region45: #{matching_forward.1} parent=43 // pred_check
          %p581 = pneg %p185
        $region46: #{matching_forward.1} parent=43 // pred_check_branch
          %583 = sbr.rel (%p581) target = $region48
        $region47: #{matching_forward.1} parent=43 // pred_region
          %s585 = ssub.s32 16, 16
          %586 = vsyncadd %s578, %s585
          %s587 = sadd.s32 %s25, %s24
          %s588 = smul.addr %s587, 16
          %s589 = scalar_lea.hbm %s6, %s588
          %s591 = sshll.u32 %s580, 4
          %s592 = int_to_ptr.vmem [resolvable:$true] %s591
          %594 = dma.vmem_to_hbm [thread:$0]  %s592, 16, %s589, %s578
        $region48: #{matching_forward.1} parent=43 // pred_fallthru
          _
      $region44: #{matching_forward.1} parent=5 // pred_fallthru
        _
      %p595 = scmp.le.s32.totalorder 2, %s15
      // Predicated region
      $region49: #{matching_forward.1} parent=5 // pred_check
        %p596 = pneg %p595
      $region50: #{matching_forward.1} parent=5 // pred_check_branch
        %598 = sbr.rel (%p596) target = $region52
      $region51: #{matching_forward.1} parent=5 // pred_region
        %s599 = ssub.s32 %s15, 2
        // Predicated region
        $region53: #{matching_forward.1} parent=51 // pred_check
          %p600 = pneg %p191
        $region54: #{matching_forward.1} parent=51 // pred_check_branch
          %602 = sbr.rel (%p600) target = $region56
        $region55: #{matching_forward.1} parent=51 // pred_region
          %s603 = sand.u32 %s176, 1
          %s604 = scalar_lea.sflag [#allocation3], %s603
          %s605 = sand.u32 %s176, 1
          %s606 = scalar_lea.vmem [#allocation2], %s605
          %607 = dma.done %s604, 16
        $region56: #{matching_forward.1} parent=51 // pred_fallthru
          _
      $region52: #{matching_forward.1} parent=5 // pred_fallthru
        _
    $region6: #{matching_forward.1} parent=1 // loop_footer
      %s19 = sadd.s32 1, %s15
    $region7: #{matching_forward.1} parent=1 // loop_footer_branch
      %14 = sbr.rel target = $region3
    $region8: #{matching_forward.1} parent=1 // loop_exit
      _
    %608 = vsyncpa [#allocation3], 1
    %s609 = scalar_lea.sflag [#allocation3], 1
    %610 = vsyncpa %s609, 1

</llo_original>
